<compile_context>
chip_gen: v5e
topology: v5e:2x2
jax: 0.10.0
libtpu: 0.0.40
codegen_flags: <defaults>
</compile_context>

<pallas_src>
import functools
import math

import jax
import jax.numpy as jnp
from jax.experimental import pallas as pl
from jax.experimental.pallas import tpu as pltpu

SEQ_LEN = 99  # max_len default from the module


def _cdiv(a: int, b: int) -> int:
    return -(-a // b)


def _round_up(a: int, b: int) -> int:
    return _cdiv(a, b) * b


def make_positional_encoding(d_model: int,
                             max_len: int = SEQ_LEN,
                             dtype=jnp.float32) -> jnp.ndarray:
    """Deterministic buffer construction, identical to the PyTorch __init__.

    Returns a dense 2-D (max_len, d_model) table in the activation dtype.
    """
    position = jnp.arange(0, max_len, dtype=jnp.float32)[:, None]            # (max_len, 1)
    div_term = jnp.exp(
        jnp.arange(0, d_model, 2, dtype=jnp.float32) * (-math.log(10000.0) / d_model)
    )                                                                         # (ceil(d/2),)
    pe = jnp.zeros((max_len, d_model), dtype=jnp.float32)
    pe = pe.at[:, 0::2].set(jnp.sin(position * div_term))
    pe = pe.at[:, 1::2].set(jnp.cos(position * div_term)[:, : d_model // 2])
    return pe.astype(dtype)


# ----------------------------------------------------------------------------
# Kernels
# ----------------------------------------------------------------------------
def _pe_add_flat_kernel(x_ref, pe_ref, o_ref, *, batch: int, d_model: int):
    """Lane-dense path: x_ref/o_ref are (ts, batch*d_model), pe_ref is (ts, d_model)."""
    pe = pe_ref[...]                                   # loaded once per block
    if batch == 1:
        o_ref[...] = x_ref[...] + pe
    else:
        # Static unroll over batch: each statement is a lane-dense slab
        # load + VPU add + unmasked store; no repeated pe in HBM, no big temp.
        for b in range(batch):
            sl = slice(b * d_model, (b + 1) * d_model)
            o_ref[:, sl] = x_ref[:, sl] + pe


def _pe_add_3d_kernel(x_ref, pe_ref, o_ref):
    """Generic path: x_ref/o_ref are (ts, B, D); pe_ref is (ts, D), broadcast over B."""
    o_ref[...] = x_ref[...] + pe_ref[...][:, None, :]


# ----------------------------------------------------------------------------
# Block sizing
# ----------------------------------------------------------------------------
def _choose_block_rows(seq_len: int, bytes_per_row: int,
                       target_block_bytes: int, align: int) -> int:
    """Sequence rows per grid step: sublane-aligned, VMEM-budgeted, >=2 steps."""
    if seq_len <= align:
        return seq_len                                 # single full-dim block
    max_aligned = (seq_len // align) * align
    ts = (int(target_block_bytes) // max(1, int(bytes_per_row))) // align * align
    ts = max(align, min(ts, max_aligned))
    n = _cdiv(seq_len, ts)
    if n == 1:
        # Always give the pipeline (and a multi-TC chip) at least two steps.
        ts = max(align, min(_round_up(_cdiv(seq_len, 2), align), max_aligned))
        n = _cdiv(seq_len, ts)
    if n > 1 and n % 2:
        # Prefer an even step count so both TensorCores (v7x) get equal work.
        ts_try = _round_up(_cdiv(seq_len, n + 1), align)
        if align <= ts_try <= max_aligned and _cdiv(seq_len, ts_try) % 2 == 0:
            ts = ts_try
    return ts


# ----------------------------------------------------------------------------
# Wrapper
# ----------------------------------------------------------------------------
def positional_encoding_forward(x: jnp.ndarray,
                                pe: jnp.ndarray,
                                *,
                                block_bytes: int = 2 << 20,
                                donate_x: bool = False) -> jnp.ndarray:
    """x: (S, B, D). pe: (max_len, D) table. Returns x + pe[:S] (broadcast over B).

    block_bytes ~= target bytes of the x-block per grid step (default 2 MiB:
    double-buffered x/out/pe ~= 8-12 MiB, safe on v5e/v6e/v7x scoped VMEM).
    """
    S, B, D = x.shape
    if pe.ndim == 3:                     # accept a legacy (max_len, 1, D) buffer too
        pe = pe.reshape(pe.shape[0], pe.shape[-1])
    max_len, d_pe = pe.shape
    if d_pe != D:
        raise ValueError(f"pe d_model {d_pe} does not match x d_model {D}")
    if S > max_len:
        raise ValueError(f"sequence length {S} exceeds positional-encoding max_len {max_len}")
    if pe.dtype != x.dtype:
        pe = pe.astype(x.dtype)          # one-off tiny cast; keeps the add single-dtype

    isz = jnp.dtype(x.dtype).itemsize
    sublane = max(8, 32 // isz)          # 8 rows f32, 16 bf16, 32 int8/fp8

    # Lane-dense flat path whenever the flattened last dim is lane-aligned
    # (review: biggest layout lever for small batch / awkward D).
    use_flat = (B == 1) or (B <= 16 and (B * D) % 128 == 0)

    if use_flat:
        BD = B * D
        bytes_per_row = (2 * BD + D) * isz                       # x + out + pe per seq row
        ts = _choose_block_rows(S, bytes_per_row, block_bytes, sublane)
        kernel = functools.partial(_pe_add_flat_kernel, batch=B, d_model=D)
        x_in = x.reshape(S, BD)                                  # free metadata reshape
        in_specs = [pl.BlockSpec((ts, BD), lambda i: (i, 0)),    # x: stream S in blocks
                    pl.BlockSpec((ts, D), lambda i: (i, 0))]     # dense pe rows
        out_specs = pl.BlockSpec((ts, BD), lambda i: (i, 0))
        out_shape = jax.ShapeDtypeStruct((S, BD), x.dtype)
    else:
        # Generic 3-D path (B not lane-foldable): budget with padded tile dims.
        b_pad = _round_up(B, sublane)
        d_pad = _round_up(D, 128)
        bytes_per_row = (2 * b_pad * d_pad + d_pad) * isz
        ts = _choose_block_rows(S, bytes_per_row, block_bytes, sublane)
        kernel = _pe_add_3d_kernel
        x_in = x
        in_specs = [pl.BlockSpec((ts, B, D), lambda i: (i, 0, 0)),
                    pl.BlockSpec((ts, D), lambda i: (i, 0))]
        out_specs = pl.BlockSpec((ts, B, D), lambda i: (i, 0, 0))
        out_shape = jax.ShapeDtypeStruct((S, B, D), x.dtype)

    # If the whole sequence fits one block (tiny S), slice pe so the pe block's
    # second-to-last dim equals its full dim (keeps the BlockSpec legal).
    pe_in = pe if ts < S else pe[:S]

    grid = (pl.cdiv(S, ts),)

    cost = pl.CostEstimate(
        flops=int(S * B * D),
        transcendentals=0,
        bytes_accessed=int((2 * S * B * D + S * D) * isz),
    )

    out = pl.pallas_call(
        kernel,
        out_shape=out_shape,
        grid=grid,
        in_specs=in_specs,
        out_specs=out_specs,
        compiler_params=pltpu.CompilerParams(
            dimension_semantics=("parallel",),       # megacore-splittable stream
            vmem_limit_bytes=32 << 20,               # headroom; safe on v5e/v6e/v7x
        ),
        cost_estimate=cost,
        input_output_aliases={0: 0} if donate_x else {},
    )(x_in, pe_in)

    return out.reshape(S, B, D) if use_flat else out


if __name__ == "__main__":
    key = jax.random.PRNGKey(0)

    # 1) Small shapes in the module's seq-first (S, B, D) layout; B*D not
    #    lane-aligned -> generic 3-D path.
    seq, batch, d_model = 8, 2, 32
    x = jax.random.normal(key, (seq, batch, d_model), dtype=jnp.float32)
    pe = make_positional_encoding(d_model, max_len=SEQ_LEN, dtype=x.dtype)
    out = positional_encoding_forward(x, pe)
    jax.block_until_ready(out)
    ref = x + pe[:seq][:, None, :]
    assert out.shape == (seq, batch, d_model)
    assert jnp.allclose(out, ref, atol=1e-6), "mismatch (3-D path)"

    # 2) Full max_len sequence, lane-dense flat path, multi-step grid with a
    #    partial trailing block (99 rows), f32.
    seq2, batch2, d_model2 = SEQ_LEN, 4, 128
    x2 = jax.random.normal(jax.random.PRNGKey(1), (seq2, batch2, d_model2), dtype=jnp.float32)
    pe2 = make_positional_encoding(d_model2, max_len=SEQ_LEN, dtype=x2.dtype)
    out2 = positional_encoding_forward(x2, pe2)
    jax.block_until_ready(out2)
    ref2 = x2 + pe2[:seq2][:, None, :]
    assert out2.shape == (seq2, batch2, d_model2)
    assert jnp.allclose(out2, ref2, atol=1e-6), "mismatch (flat path, default blocks)"

    # 2b) Same shapes with a tiny block budget to exercise a longer streamed grid.
    out2b = positional_encoding_forward(x2, pe2, block_bytes=64 * 1024)
    jax.block_until_ready(out2b)
    assert jnp.allclose(out2b, ref2, atol=1e-6), "mismatch (flat path, small blocks)"

    # 3) Batch-1 flat path.
    seq3, batch3, d_model3 = 16, 1, 256
    x3 = jax.random.normal(jax.random.PRNGKey(2), (seq3, batch3, d_model3), dtype=jnp.float32)
    pe3 = make_positional_encoding(d_model3, max_len=SEQ_LEN, dtype=x3.dtype)
    out3 = positional_encoding_forward(x3, pe3)
    jax.block_until_ready(out3)
    ref3 = x3 + pe3[:seq3][:, None, :]
    assert jnp.allclose(out3, ref3, atol=1e-6), "mismatch (flat path, B=1)"

    # 4) bf16 activations: exercises dtype-aware (16-row) sublane alignment.
    x4 = jax.random.normal(jax.random.PRNGKey(3), (SEQ_LEN, 2, 128), dtype=jnp.bfloat16)
    pe4 = make_positional_encoding(128, max_len=SEQ_LEN, dtype=jnp.bfloat16)
    out4 = positional_encoding_forward(x4, pe4)
    jax.block_until_ready(out4)
    ref4 = x4 + pe4[:SEQ_LEN][:, None, :]
    assert jnp.allclose(out4.astype(jnp.float32), ref4.astype(jnp.float32),
                        atol=1e-2), "mismatch (bf16 flat path)"

    print("KERNEL_OK")
</pallas_src>

<mosaic_0001>
module attributes {stable_mosaic.version = 11 : i64} {
  func.func @_pe_add_3d_kernel(%arg0: i32, %arg1: memref<8x2x32xf32, #tpu.memory_space<vmem>>, %arg2: memref<8x32xf32, #tpu.memory_space<vmem>>, %arg3: memref<8x2x32xf32, #tpu.memory_space<vmem>>) attributes {dimension_semantics = [#tpu.dimension_semantics<parallel>], iteration_bounds = array<i64: 1>, scalar_prefetch = 0 : i64, scratch_operands = 0 : i64, tpu.core_type = #tpu.core_type<tc>, window_params = [{transform_indices = @transform_0, window_bounds = array<i64: 8, 2, 32>}, {transform_indices = @transform_1, window_bounds = array<i64: 8, 32>}, {transform_indices = @transform_2, window_bounds = array<i64: 8, 2, 32>}]} {
    %c0 = arith.constant 0 : index
    %c0_0 = arith.constant 0 : index
    %c0_1 = arith.constant 0 : index
    %0 = vector.load %arg1[%c0, %c0_0, %c0_1] : memref<8x2x32xf32, #tpu.memory_space<vmem>>, vector<8x2x32xf32>
    %c0_2 = arith.constant 0 : index
    %c0_3 = arith.constant 0 : index
    %1 = vector.load %arg2[%c0_2, %c0_3] : memref<8x32xf32, #tpu.memory_space<vmem>>, vector<8x32xf32>
    %2 = vector.shape_cast %1 : vector<8x32xf32> to vector<8x1x32xf32>
    %3 = vector.broadcast %2 : vector<8x1x32xf32> to vector<8x2x32xf32>
    %4 = arith.addf %0, %3 : vector<8x2x32xf32>
    %c0_4 = arith.constant 0 : index
    %c0_5 = arith.constant 0 : index
    %c0_6 = arith.constant 0 : index
    %5 = vector.load %arg3[%c0_4, %c0_5, %c0_6] : memref<8x2x32xf32, #tpu.memory_space<vmem>>, vector<8x2x32xf32>
    tpu.vector_store %arg3[%c0_4, %c0_5, %c0_6], %4 {strides = array<i32>} : memref<8x2x32xf32, #tpu.memory_space<vmem>>, vector<8x2x32xf32>,
    return
  }
  func.func @transform_0(%arg0: i32) -> (i32, i32, i32) {
    %c0_i32 = arith.constant 0 : i32
    %c0_i32_0 = arith.constant 0 : i32
    %c0_i32_1 = arith.constant 0 : i32
    return %arg0, %c0_i32, %c0_i32_0 : i32, i32, i32
  }
  func.func @transform_1(%arg0: i32) -> (i32, i32) {
    %c0_i32 = arith.constant 0 : i32
    %c0_i32_0 = arith.constant 0 : i32
    return %arg0, %c0_i32 : i32, i32
  }
  func.func @transform_2(%arg0: i32) -> (i32, i32, i32) {
    %c0_i32 = arith.constant 0 : i32
    %c0_i32_0 = arith.constant 0 : i32
    %c0_i32_1 = arith.constant 0 : i32
    return %arg0, %c0_i32, %c0_i32_0 : i32, i32, i32
  }
}

</mosaic_0001>

<llo_original>
// kernel: tpu_custom_call.1
$region0: #{tpu_custom_call.1}
  #allocation0 [shape = 'u32[]', space=smem, size = 0x4, offset = 0x4, fixed_abs, tag = 'smem constant byte address 0x4 - core index']
  #allocation1 [shape = 'u32[72,128]{1,0:T(1,128)}', space=vmem, size = 0x9000, scoped, tag = 'internal scratch']
  %s0 = inlined_call_operand.hbm [shape: f32[8,2,32], index: 0, kind: input, shape index: {}]
  %s1 = inlined_call_operand.hbm [shape: f32[8,32], index: 1, kind: input, shape index: {}]
  %s2 = inlined_call_operand.hbm [shape: f32[8,2,32], index: 2, kind: output, shape index: {}]
  %s3 = sld [smem:[#allocation0]]
  $region26: #{tpu_custom_call.1} parent=0
    _
  %s5 = ssub.s32 1, %s3
  %s6 = scalar_select 0, %s5, %s3
  $region1: #{tpu_custom_call.1} parent=0
    #allocation2 [shape = 'u8[8192]{0}', space=vmem, size = 0x2000, scoped, tag = 'input window, operand 0, single buffered']
    #allocation3 [shape = 's32[1]{0}', space=sflag, size = 0x4, scoped, tag = 'scoped memory for tpu_custom_call.1']
    #allocation4 [shape = 's32[1]{0}', space=sflag, size = 0x4, scoped, tag = 'scoped memory for tpu_custom_call.1']
    #allocation5 [shape = 'u8[4096]{0}', space=vmem, size = 0x1000, scoped, tag = 'input window, operand 1, single buffered']
    #allocation6 [shape = 's32[1]{0}', space=sflag, size = 0x4, scoped, tag = 'scoped memory for tpu_custom_call.1']
    #allocation7 [shape = 'u8[8192]{0}', space=vmem, size = 0x2000, scoped, tag = 'output window, operand 0, single buffered']
    %7 = vsyncpa [#allocation3], 0
    %8 = vsyncpa [#allocation6], 0
    %9 = vsyncpa [#allocation4], 0
    // Predicated region
    $region2: #{tpu_custom_call.1} parent=1 // pred_check
      _
    $region3: #{tpu_custom_call.1} parent=1 // pred_check_branch
      %11 = sbr.rel (0) target = $region5
    $region4: #{tpu_custom_call.1} parent=1 // pred_region
      %13 = vsyncadd [#allocation3], 0
      %s14 = sshll.u32 %s0, 4
      %s15 = int_to_ptr.hbm [resolvable:$true] %s14
      %s16 = sshll.u32 [#allocation2], 4
      %s17 = int_to_ptr.vmem [resolvable:$true] %s16
      %22 = dma.hbm_to_vmem [thread:$0]  %s15, 256, %s17, [#allocation3], 32, 32, 2
    $region5: #{tpu_custom_call.1} parent=1 // pred_fallthru
      _
    // Predicated region
    $region6: #{tpu_custom_call.1} parent=1 // pred_check
      _
    $region7: #{tpu_custom_call.1} parent=1 // pred_check_branch
      %24 = sbr.rel (0) target = $region9
    $region8: #{tpu_custom_call.1} parent=1 // pred_region
      %26 = vsyncadd [#allocation6], 0
      %s28 = sshll.u32 %s1, 4
      %s29 = int_to_ptr.hbm [resolvable:$true] %s28
      %s30 = sshll.u32 [#allocation5], 4
      %s31 = int_to_ptr.vmem [resolvable:$true] %s30
      %33 = dma.hbm_to_vmem [thread:$0]  %s29, 128, %s31, [#allocation6]
    $region9: #{tpu_custom_call.1} parent=1 // pred_fallthru
      _
    // Predicated region
    $region10: #{tpu_custom_call.1} parent=1 // pred_check
      _
    $region11: #{tpu_custom_call.1} parent=1 // pred_check_branch
      %35 = sbr.rel (0) target = $region13
    $region12: #{tpu_custom_call.1} parent=1 // pred_region
      %37 = dma.done [#allocation3], 256
    $region13: #{tpu_custom_call.1} parent=1 // pred_fallthru
      _
    // Predicated region
    $region14: #{tpu_custom_call.1} parent=1 // pred_check
      _
    $region15: #{tpu_custom_call.1} parent=1 // pred_check_branch
      %39 = sbr.rel (0) target = $region17
    $region16: #{tpu_custom_call.1} parent=1 // pred_region
      %41 = dma.done [#allocation6], 128
    $region17: #{tpu_custom_call.1} parent=1 // pred_fallthru
      _
    %v42 = vld [vmem:[#allocation2] sm:$0x3]
    %v43 = vld [vmem:[#allocation2 + $0x2] sm:$0x3]
    %v44 = vld [vmem:[#allocation2 + $0x4] sm:$0x3]
    %v45 = vld [vmem:[#allocation2 + $0x6] sm:$0x3]
    %v46 = vld [vmem:[#allocation2 + $0x8] sm:$0x3]
    %v47 = vld [vmem:[#allocation2 + $0xa] sm:$0x3]
    %v48 = vld [vmem:[#allocation2 + $0xc] sm:$0x3]
    %v49 = vld [vmem:[#allocation2 + $0xe] sm:$0x3]
    %v50 = vld [vmem:[#allocation5] sm:$0xff]
    %v52 = vrot.slane %v50, 1
    %v53 = vrot.slane %v50, 2
    %v54 = vrot.slane %v50, 3
    %v55 = vrot.slane %v50, 4
    %v56 = vrot.slane %v50, 5
    %v57 = vrot.slane %v50, 6
    %v58 = vrot.slane %v50, 7
    %v59 = vperm.slane %v50, 0
    %v60 = vperm.slane %v52, 0
    %v61 = vperm.slane %v53, 0
    %v62 = vperm.slane %v54, 0
    %v63 = vperm.slane %v55, 0
    %v64 = vperm.slane %v56, 0
    %v65 = vperm.slane %v57, 0
    %v66 = vperm.slane %v58, 0
    %v75 = vadd.f32 %v42, %v59
    %v76 = vadd.f32 %v43, %v60
    %v77 = vadd.f32 %v44, %v61
    %v78 = vadd.f32 %v45, %v62
    %v79 = vadd.f32 %v46, %v63
    %v80 = vadd.f32 %v47, %v64
    %v81 = vadd.f32 %v48, %v65
    %v82 = vadd.f32 %v49, %v66
    %vm83 = vcmask 254976
    %84 = vst.msk [vmem:[#allocation7] sm:$0x3] %vm83, %v75
    %85 = vst.msk [vmem:[#allocation7 + $0x2] sm:$0x3] %vm83, %v76
    %86 = vst.msk [vmem:[#allocation7 + $0x4] sm:$0x3] %vm83, %v77
    %87 = vst.msk [vmem:[#allocation7 + $0x6] sm:$0x3] %vm83, %v78
    %88 = vst.msk [vmem:[#allocation7 + $0x8] sm:$0x3] %vm83, %v79
    %89 = vst.msk [vmem:[#allocation7 + $0xa] sm:$0x3] %vm83, %v80
    %90 = vst.msk [vmem:[#allocation7 + $0xc] sm:$0x3] %vm83, %v81
    %91 = vst.msk [vmem:[#allocation7 + $0xe] sm:$0x3] %vm83, %v82
    // Predicated region
    $region18: #{tpu_custom_call.1} parent=1 // pred_check
      _
    $region19: #{tpu_custom_call.1} parent=1 // pred_check_branch
      %93 = sbr.rel (0) target = $region21
    $region20: #{tpu_custom_call.1} parent=1 // pred_region
      %95 = vsyncadd [#allocation4], 0
      %s96 = sshll.u32 [#allocation7], 4
      %s97 = int_to_ptr.vmem [resolvable:$true] %s96
      %s98 = sshll.u32 %s2, 4
      %s99 = int_to_ptr.hbm [resolvable:$true] %s98
      %104 = dma.vmem_to_hbm [thread:$0]  %s97, 256, %s99, [#allocation4], 32, 32, 2
    $region21: #{tpu_custom_call.1} parent=1 // pred_fallthru
      _
    // Predicated region
    $region22: #{tpu_custom_call.1} parent=1 // pred_check
      _
    $region23: #{tpu_custom_call.1} parent=1 // pred_check_branch
      %106 = sbr.rel (0) target = $region25
    $region24: #{tpu_custom_call.1} parent=1 // pred_region
      %108 = dma.done [#allocation4], 256
    $region25: #{tpu_custom_call.1} parent=1 // pred_fallthru
      _
    %109 = vsyncpa [#allocation3], 1
    %110 = vsyncpa [#allocation6], 1
    %111 = vsyncpa [#allocation4], 1

</llo_original>
